<compile_context>
chip_gen: v5e
topology: v5e:2x2
jax: 0.10.0
libtpu: 0.0.40
codegen_flags: <defaults>
</compile_context>

<pallas_src>
import functools

import jax
import jax.numpy as jnp
from jax.experimental import pallas as pl
from jax.experimental.pallas import tpu as pltpu


def _round_up(a, m):
    return ((a + m - 1) // m) * m


def _vmem_budget_bytes():
    """Usable VMEM budget: ~80% of physical, capped at 100 MiB; conservative
    64 MiB (v7x per-core) fallback if the query is unavailable."""
    cap = None
    try:
        cap = getattr(pltpu.get_tpu_info(), "vmem_capacity_bytes", None)
    except Exception:
        cap = None
    if not cap:
        cap = 64 << 20
    return min(int(cap * 0.8), 100 << 20)


def _footprint_bytes(tb, tk, H, x_bytes, out_bytes, use_scratch):
    """Double-buffered VMEM footprint of one grid step."""
    x_buf = 2 * tb * H * x_bytes                 # x tile (original dtype)
    w_buf = 2 * (H * tk + tk * H) * 2            # bf16 W1 / W2 blocks
    b_buf = 2 * 8 * (tk + H) * 4                 # f32 bias rows (sublane-padded)
    o_buf = 2 * tb * H * out_bytes               # output tile
    s_buf = tb * H * 4 if use_scratch else 0     # f32 accumulator scratch
    return x_buf + w_buf + b_buf + o_buf + s_buf


def _pick_tiles(B, H, x_bytes, out_bytes, streamed_needs_scratch, budget, tb_req):
    """Choose (tb, tk, resident).  Prefer resident weights (tk == H)."""
    tb = min(tb_req, _round_up(B, 8))
    # Megacore: give both v7x TensorCores work when the batch allows it.
    if _round_up(B, tb) // tb < 2 and tb >= 16:
        tb = max(8, _round_up(tb // 2, 8))

    # Streamed-fallback tk candidates: multiples of 256 dividing H (largest
    # first, MXU-native on v6e/v7x), then 128 as a last resort.
    tk_cands = sorted([t for t in range(256, H, 256) if H % t == 0],
                      reverse=True) + [128]

    while True:
        if _footprint_bytes(tb, H, H, x_bytes, out_bytes, False) <= budget:
            return tb, H, True
        for tk in tk_cands:
            if _footprint_bytes(tb, tk, H, x_bytes, out_bytes,
                                streamed_needs_scratch) <= budget:
                return tb, tk, False
        if tb <= 8:
            raise ValueError(f"hidden dim {H} too large for VMEM even at tb=8")
        tb = max(8, _round_up(tb // 2, 8))


def _resnet_mlp_resident_kernel(x_ref, w1_ref, b1_ref, w2_ref, b2_ref, o_ref,
                                *, resnet):
    """Fast path: both weights resident in VMEM, grid = (batch_tiles,)."""
    x = x_ref[...]                                 # (tb, H) original dtype
    xb = x.astype(jnp.bfloat16)                    # in-kernel cast (VPU slack)
    h = jnp.dot(xb, w1_ref[...], preferred_element_type=jnp.float32)
    h = jnp.maximum(h + b1_ref[...], 0.0)          # f32 bias + ReLU
    y = jnp.dot(h.astype(jnp.bfloat16), w2_ref[...],
                preferred_element_type=jnp.float32)
    y = y + b2_ref[...]
    if resnet:
        y = y + x.astype(jnp.float32)              # full-precision identity
    o_ref[...] = y.astype(o_ref.dtype)


def _resnet_mlp_streamed_kernel(x_ref, w1_ref, b1_ref, w2_ref, b2_ref, o_ref,
                                *scratch, resnet):
    """Streamed path: grid = (batch_tiles, hidden_chunks).  If no scratch is
    provided the f32 output tile itself is the accumulator."""
    acc_ref = scratch[0] if scratch else o_ref
    k = pl.program_id(1)
    nk = pl.num_programs(1)

    # Fold the second-layer bias into the accumulator init (added exactly once).
    @pl.when(k == 0)
    def _init():
        acc_ref[...] = jnp.broadcast_to(
            b2_ref[...].astype(acc_ref.dtype), acc_ref.shape)

    x = x_ref[...]                                 # (tb, H) original dtype
    xb = x.astype(jnp.bfloat16)
    # First layer, current hidden chunk: (tb, H) @ (H, tk) -> (tb, tk) f32.
    h = jnp.dot(xb, w1_ref[...], preferred_element_type=jnp.float32)
    h = jnp.maximum(h + b1_ref[...], 0.0)
    # Second layer, accumulate this chunk's contribution: (tb, tk) @ (tk, H).
    acc_ref[...] += jnp.dot(h.astype(jnp.bfloat16), w2_ref[...],
                            preferred_element_type=jnp.float32)

    @pl.when(k == nk - 1)
    def _finalize():
        y = acc_ref[...].astype(jnp.float32)
        if resnet:
            y = y + x.astype(jnp.float32)          # full-precision identity
        o_ref[...] = y.astype(o_ref.dtype)


def resnet_forward(x, w1, b1, w2, b2, *, resnet=True, tb=256, tk=None,
                   out_dtype=None):
    """y = net(x) + (x if resnet else 0.0), net = Linear -> ReLU -> Linear."""
    B, H = x.shape
    assert w1.shape == (H, H) and w2.shape == (H, H)
    assert b1.shape == (H,) and b2.shape == (H,)
    assert H % 128 == 0, "hidden dim must be a multiple of the 128-lane tile"
    out_dtype = jnp.dtype(out_dtype or x.dtype)
    x_bytes = jnp.dtype(x.dtype).itemsize
    out_bytes = out_dtype.itemsize
    needs_scratch = out_dtype != jnp.dtype(jnp.float32)

    budget = _vmem_budget_bytes()
    if tk is None:
        tb, tk, resident = _pick_tiles(B, H, x_bytes, out_bytes,
                                       needs_scratch, budget, tb)
    else:  # explicit override (testing / tuning)
        assert H % tk == 0 and tk % 128 == 0
        tb = min(tb, _round_up(B, 8))
        resident = (tk == H)
    use_scratch = (not resident) and needs_scratch

    # Weights/biases cast once outside the hot loop (weights must be bf16 for
    # the MXU); x is passed through untouched and cast inside the kernel.
    w1b = w1.astype(jnp.bfloat16)
    w2b = w2.astype(jnp.bfloat16)
    b1f = b1.astype(jnp.float32).reshape(1, H)
    b2f = b2.astype(jnp.float32).reshape(1, H)

    B_pad = _round_up(B, tb)
    xp = jnp.pad(x, ((0, B_pad - B), (0, 0))) if B_pad != B else x
    nb = B_pad // tb

    fp = _footprint_bytes(tb, tk, H, x_bytes, out_bytes, use_scratch)
    # Never cap below the computed footprint; leave some headroom.
    vmem_limit = int(max(min(int(1.25 * fp) + (2 << 20), budget),
                         fp + (1 << 20), 32 << 20))

    if resident:
        kernel = functools.partial(_resnet_mlp_resident_kernel, resnet=resnet)
        grid_spec = pltpu.PrefetchScalarGridSpec(
            num_scalar_prefetch=0,
            grid=(nb,),
            in_specs=[
                pl.BlockSpec((tb, H), lambda i: (i, 0)),   # x tile
                pl.BlockSpec((H, H), lambda i: (0, 0)),    # W1 (resident)
                pl.BlockSpec((1, H), lambda i: (0, 0)),    # b1
                pl.BlockSpec((H, H), lambda i: (0, 0)),    # W2 (resident)
                pl.BlockSpec((1, H), lambda i: (0, 0)),    # b2
            ],
            out_specs=pl.BlockSpec((tb, H), lambda i: (i, 0)),
            scratch_shapes=[],
        )
        dims = ("parallel",)
    else:
        nk = H // tk
        kernel = functools.partial(_resnet_mlp_streamed_kernel, resnet=resnet)
        grid_spec = pltpu.PrefetchScalarGridSpec(
            num_scalar_prefetch=0,
            grid=(nb, nk),                                  # batch, hidden-chunk
            in_specs=[
                pl.BlockSpec((tb, H), lambda i, k: (i, 0)),  # x tile (per batch)
                pl.BlockSpec((H, tk), lambda i, k: (0, k)),  # W1 chunk
                pl.BlockSpec((1, tk), lambda i, k: (0, k)),  # b1 chunk
                pl.BlockSpec((tk, H), lambda i, k: (k, 0)),  # W2 chunk
                pl.BlockSpec((1, H), lambda i, k: (0, 0)),   # b2
            ],
            out_specs=pl.BlockSpec((tb, H), lambda i, k: (i, 0)),
            scratch_shapes=([pltpu.VMEM((tb, H), jnp.float32)]
                            if use_scratch else []),
        )
        dims = ("parallel", "arbitrary")

    out = pl.pallas_call(
        kernel,
        out_shape=jax.ShapeDtypeStruct((B_pad, H), out_dtype),
        grid_spec=grid_spec,
        compiler_params=pltpu.CompilerParams(
            dimension_semantics=dims,
            vmem_limit_bytes=vmem_limit,
        ),
    )(xp, w1b, b1f, w2b, b2f)

    return out[:B] if B_pad != B else out


def _reference(x, w1, b1, w2, b2, resnet):
    """Mirrors the kernel's math: bf16 MXU operands, f32 accumulation,
    full-precision (f32) identity path."""
    h = jnp.dot(x.astype(jnp.bfloat16), w1.astype(jnp.bfloat16),
                preferred_element_type=jnp.float32) + b1.astype(jnp.float32)
    h = jnp.maximum(h, 0.0)
    y = jnp.dot(h.astype(jnp.bfloat16), w2.astype(jnp.bfloat16),
                preferred_element_type=jnp.float32) + b2.astype(jnp.float32)
    if resnet:
        y = y + x.astype(jnp.float32)
    return y


if __name__ == "__main__":
    # TODO(synk): the PyTorch module wraps an arbitrary `net`; here it is
    # instantiated as a 2-layer MLP (Linear -> ReLU -> Linear) so the residual
    # add is shape-preserving.
    H = 256          # hidden dim (multiple of 128)
    key = jax.random.PRNGKey(0)
    kx, k1, k2, k3, k4, kx2, kx3 = jax.random.split(key, 7)

    w1 = jax.random.normal(k1, (H, H), dtype=jnp.float32) * (1.0 / jnp.sqrt(H))
    b1 = jax.random.normal(k2, (H,), dtype=jnp.float32) * 0.01
    w2 = jax.random.normal(k3, (H, H), dtype=jnp.float32) * (1.0 / jnp.sqrt(H))
    b2 = jax.random.normal(k4, (H,), dtype=jnp.float32) * 0.01

    # Case 1: resnet=True, resident-weight fast path (tk == H auto-selected).
    B1 = 64
    x1 = jax.random.normal(kx, (B1, H), dtype=jnp.float32)
    y1 = resnet_forward(x1, w1, b1, w2, b2, resnet=True)
    jax.block_until_ready(y1)
    ref1 = _reference(x1, w1, b1, w2, b2, resnet=True)
    assert y1.shape == (B1, H) and y1.dtype == jnp.float32
    assert jnp.allclose(y1, ref1, atol=2e-3, rtol=2e-3)

    # Case 2: resnet=False (identity = 0.0), ragged batch exercising padding.
    B2 = 50
    x2 = jax.random.normal(kx2, (B2, H), dtype=jnp.float32)
    y2 = resnet_forward(x2, w1, b1, w2, b2, resnet=False)
    jax.block_until_ready(y2)
    ref2 = _reference(x2, w1, b1, w2, b2, resnet=False)
    assert y2.shape == (B2, H)
    assert jnp.allclose(y2, ref2, atol=2e-3, rtol=2e-3)

    # Case 3: forced streamed-weight path (tk < H), f32 output accumulated
    # directly into the resident output tile (no scratch).
    B3 = 64
    x3 = jax.random.normal(kx3, (B3, H), dtype=jnp.float32)
    y3 = resnet_forward(x3, w1, b1, w2, b2, resnet=True, tk=128)
    jax.block_until_ready(y3)
    ref3 = _reference(x3, w1, b1, w2, b2, resnet=True)
    assert jnp.allclose(y3, ref3, atol=2e-3, rtol=2e-3)

    # Case 4: streamed path with bf16 output (uses the f32 scratch accumulator).
    y4 = resnet_forward(x3, w1, b1, w2, b2, resnet=True, tk=128,
                        out_dtype=jnp.bfloat16)
    jax.block_until_ready(y4)
    assert y4.dtype == jnp.bfloat16
    assert jnp.allclose(y4.astype(jnp.float32), ref3, atol=5e-2, rtol=5e-2)

    print("KERNEL_OK")
</pallas_src>

<mosaic_0001>
module attributes {stable_mosaic.version = 11 : i64} {
  func.func @_resnet_mlp_resident_kernel(%arg0: i32, %arg1: memref<32x256xf32, #tpu.memory_space<vmem>>, %arg2: memref<256x256xbf16, #tpu.memory_space<vmem>>, %arg3: memref<1x256xf32, #tpu.memory_space<vmem>>, %arg4: memref<256x256xbf16, #tpu.memory_space<vmem>>, %arg5: memref<1x256xf32, #tpu.memory_space<vmem>>, %arg6: memref<32x256xf32, #tpu.memory_space<vmem>>) attributes {dimension_semantics = [#tpu.dimension_semantics<parallel>], iteration_bounds = array<i64: 2>, scalar_prefetch = 0 : i64, scratch_operands = 0 : i64, tpu.core_type = #tpu.core_type<tc>, window_params = [{transform_indices = @transform_0, window_bounds = array<i64: 32, 256>}, {pipeline_mode = #tpu.pipeline_mode<synchronous>, transform_indices = @transform_1, window_bounds = array<i64: 256, 256>}, {pipeline_mode = #tpu.pipeline_mode<synchronous>, transform_indices = @transform_2, window_bounds = array<i64: 1, 256>}, {pipeline_mode = #tpu.pipeline_mode<synchronous>, transform_indices = @transform_3, window_bounds = array<i64: 256, 256>}, {pipeline_mode = #tpu.pipeline_mode<synchronous>, transform_indices = @transform_4, window_bounds = array<i64: 1, 256>}, {transform_indices = @transform_5, window_bounds = array<i64: 32, 256>}]} {
    %c0 = arith.constant 0 : index
    %c0_0 = arith.constant 0 : index
    %0 = vector.load %arg1[%c0, %c0_0] : memref<32x256xf32, #tpu.memory_space<vmem>>, vector<32x256xf32>
    %1 = arith.truncf %0 : vector<32x256xf32> to vector<32x256xbf16>
    %c0_1 = arith.constant 0 : index
    %c0_2 = arith.constant 0 : index
    %2 = vector.load %arg2[%c0_1, %c0_2] : memref<256x256xbf16, #tpu.memory_space<vmem>>, vector<256x256xbf16>
    %cst = arith.constant dense<0.000000e+00> : vector<32x256xf32>
    %3 = tpu.matmul %1, %2, %cst {dimension_numbers = #tpu.dot_dimension_numbers<[1], [0], [0], [1], [0, 0, 1, 1], [], []>} : vector<32x256xbf16>, vector<256x256xbf16>, vector<32x256xf32> -> vector<32x256xf32>
    %c0_3 = arith.constant 0 : index
    %c0_4 = arith.constant 0 : index
    %4 = vector.load %arg3[%c0_3, %c0_4] : memref<1x256xf32, #tpu.memory_space<vmem>>, vector<1x256xf32>
    %5 = vector.broadcast %4 : vector<1x256xf32> to vector<32x256xf32>
    %6 = arith.addf %3, %5 : vector<32x256xf32>
    %cst_5 = arith.constant 0.000000e+00 : f32
    %7 = vector.broadcast %cst_5 : f32 to vector<32x256xf32>
    %8 = arith.maximumf %6, %7 : vector<32x256xf32>
    %9 = arith.truncf %8 : vector<32x256xf32> to vector<32x256xbf16>
    %c0_6 = arith.constant 0 : index
    %c0_7 = arith.constant 0 : index
    %10 = vector.load %arg4[%c0_6, %c0_7] : memref<256x256xbf16, #tpu.memory_space<vmem>>, vector<256x256xbf16>
    %cst_8 = arith.constant dense<0.000000e+00> : vector<32x256xf32>
    %11 = tpu.matmul %9, %10, %cst_8 {dimension_numbers = #tpu.dot_dimension_numbers<[1], [0], [0], [1], [0, 0, 1, 1], [], []>} : vector<32x256xbf16>, vector<256x256xbf16>, vector<32x256xf32> -> vector<32x256xf32>
    %c0_9 = arith.constant 0 : index
    %c0_10 = arith.constant 0 : index
    %12 = vector.load %arg5[%c0_9, %c0_10] : memref<1x256xf32, #tpu.memory_space<vmem>>, vector<1x256xf32>
    %13 = vector.broadcast %12 : vector<1x256xf32> to vector<32x256xf32>
    %14 = arith.addf %11, %13 : vector<32x256xf32>
    %15 = arith.addf %14, %0 : vector<32x256xf32>
    %c0_11 = arith.constant 0 : index
    %c0_12 = arith.constant 0 : index
    %16 = vector.load %arg6[%c0_11, %c0_12] : memref<32x256xf32, #tpu.memory_space<vmem>>, vector<32x256xf32>
    tpu.vector_store %arg6[%c0_11, %c0_12], %15 {strides = array<i32>} : memref<32x256xf32, #tpu.memory_space<vmem>>, vector<32x256xf32>,
    return
  }
  func.func @transform_0(%arg0: i32) -> (i32, i32) {
    %c0_i32 = arith.constant 0 : i32
    %c0_i32_0 = arith.constant 0 : i32
    return %arg0, %c0_i32 : i32, i32
  }
  func.func @transform_1(%arg0: i32) -> (i32, i32) {
    %c0_i32 = arith.constant 0 : i32
    %c0_i32_0 = arith.constant 0 : i32
    %c0_i32_1 = arith.constant 0 : i32
    return %c0_i32, %c0_i32_0 : i32, i32
  }
  func.func @transform_2(%arg0: i32) -> (i32, i32) {
    %c0_i32 = arith.constant 0 : i32
    %c0_i32_0 = arith.constant 0 : i32
    %c0_i32_1 = arith.constant 0 : i32
    return %c0_i32, %c0_i32_0 : i32, i32
  }
  func.func @transform_3(%arg0: i32) -> (i32, i32) {
    %c0_i32 = arith.constant 0 : i32
    %c0_i32_0 = arith.constant 0 : i32
    %c0_i32_1 = arith.constant 0 : i32
    return %c0_i32, %c0_i32_0 : i32, i32
  }
  func.func @transform_4(%arg0: i32) -> (i32, i32) {
    %c0_i32 = arith.constant 0 : i32
    %c0_i32_0 = arith.constant 0 : i32
    %c0_i32_1 = arith.constant 0 : i32
    return %c0_i32, %c0_i32_0 : i32, i32
  }
  func.func @transform_5(%arg0: i32) -> (i32, i32) {
    %c0_i32 = arith.constant 0 : i32
    %c0_i32_0 = arith.constant 0 : i32
    return %arg0, %c0_i32 : i32, i32
  }
}

</mosaic_0001>

<llo_original>
// kernel: tpu_custom_call.1
$region0: #{tpu_custom_call.1}
  #allocation0 [shape = 'u32[]', space=smem, size = 0x4, offset = 0x4, fixed_abs, tag = 'smem constant byte address 0x4 - core index']
  #allocation1 [shape = 'u32[72,128]{1,0:T(1,128)}', space=vmem, size = 0x9000, scoped, tag = 'internal scratch']
  %s0 = inlined_call_operand.hbm [shape: f32[64,256], index: 0, kind: input, shape index: {}]
  %s1 = inlined_call_operand.hbm [shape: bf16[256,256], index: 1, kind: input, shape index: {}]
  %s2 = inlined_call_operand.hbm [shape: f32[1,256], index: 2, kind: input, shape index: {}]
  %s3 = inlined_call_operand.hbm [shape: bf16[256,256], index: 3, kind: input, shape index: {}]
  %s4 = inlined_call_operand.vmem [shape: f32[1,256], index: 4, kind: input, shape index: {}]
  %s5 = inlined_call_operand.hbm [shape: f32[64,256], index: 5, kind: output, shape index: {}]
  %s6 = sld [smem:[#allocation0]]
  $region69: #{tpu_custom_call.1} parent=0
    _
  %s8 = ssub.s32 1, %s6
  %s9 = scalar_select 0, %s8, %s6
  $region1: #{tpu_custom_call.1} parent=0
    #allocation2 [shape = 'u8[65536]{0}', space=vmem, size = 0x10000, scoped, tag = 'input window, operand 0']
    #allocation3 [shape = 's32[2]{0}', space=sflag, size = 0x8, scoped, tag = 'scoped memory for tpu_custom_call.1']
    #allocation4 [shape = 's32[2]{0}', space=sflag, size = 0x8, scoped, tag = 'scoped memory for tpu_custom_call.1']
    #allocation5 [shape = 'u8[131072]{0}', space=vmem, size = 0x20000, scoped, tag = 'input window, operand 1, single buffered']
    #allocation6 [shape = 's32[1]{0}', space=sflag, size = 0x4, scoped, tag = 'scoped memory for tpu_custom_call.1']
    #allocation7 [shape = 'u8[1024]{0}', space=vmem, size = 0x400, scoped, tag = 'input window, operand 2, single buffered']
    #allocation8 [shape = 'u8[131072]{0}', space=vmem, size = 0x20000, scoped, tag = 'input window, operand 3, single buffered']
    #allocation9 [shape = 's32[1]{0}', space=sflag, size = 0x4, scoped, tag = 'scoped memory for tpu_custom_call.1']
    #allocation10 [shape = 'u8[65536]{0}', space=vmem, size = 0x10000, scoped, tag = 'output window, operand 0']
    %10 = vsyncpa [#allocation3], 0
    %s11 = scalar_lea.sflag [#allocation3], 1
    %12 = vsyncpa %s11, 0
    %13 = vsyncpa [#allocation6], 0
    %14 = vsyncpa [#allocation9], 0
    %15 = vsyncpa [#allocation4], 0
    %s16 = scalar_lea.sflag [#allocation4], 1
    %17 = vsyncpa %s16, 0
    loop: start=0, step=1, limit=4
    $region2: #{tpu_custom_call.1} parent=1 // loop_pre_header
      _
    $region3: #{tpu_custom_call.1} parent=1 // loop_header
      %s19 = sphi 0, %s23
      %p20 = scmp.ge.s32.totalorder %s19, 4
      %s29 = sphi 0, %s31
      %s32 = sphi 0, %s29
      %s33 = sphi 0, %s32
      %s49 = sphi 0, %s33
      %s53 = sphi 0, %s53
      %s55 = sphi 0, %s53
      %s56 = sphi 0, %s55
      %s70 = sphi 0, %s56
      %s74 = sphi 0, %s74
      %s76 = sphi 0, %s74
      %s77 = sphi 0, %s76
      %s91 = sphi 0, %s77
      %s95 = sphi 0, %s95
      %s97 = sphi 0, %s95
      %s98 = sphi 0, %s97
      %s112 = sphi 0, %s98
      %s116 = sphi 0, %s116
      %s118 = sphi 0, %s116
      %s119 = sphi 0, %s118
      %s133 = sphi 0, %s119
      %s139 = sphi 0, %s141
      %s142 = sphi 0, %s139
      %s143 = sphi 0, %s142
      %s159 = sphi 0, %s143
    $region4: #{tpu_custom_call.1} parent=1 // loop_header_branch
      %22 = sbr.rel (%p20) target = $region8
    $region5: #{tpu_custom_call.1} parent=1 // loop_body
      %s24 = ssub.s32 %s19, 1
      %s25 = ssub.s32 %s19, 2
      %s26 = sadd.s32 %s19, 1
      %s27 = ssub.s32 %s19, %s26
      %p28 = scmp.eq.s32.totalorder %s27, 0
      %s30 = sadd.s32 %s29, 1
      %s31 = scalar_select %p28, %s29, %s30
      %p34 = pneg %p28
      %p35 = scmp.eq.s32.totalorder %s19, 1
      %p36 = por %p34, %p35
      %p37 = scmp.ne.s32.totalorder %s29, %s32
      %p38 = scmp.eq.s32.totalorder %s19, 0
      %p39 = por %p37, %p38
      %p40 = scmp.ne.s32.totalorder %s29, %s32
      %p41 = scmp.eq.s32.totalorder %s24, 1
      %p42 = por %p40, %p41
      %p43 = scmp.ne.s32.totalorder %s32, %s33
      %p44 = scmp.eq.s32.totalorder %s24, 0
      %p45 = por %p43, %p44
      %p46 = scmp.ne.s32.totalorder %s32, %s33
      %p47 = scmp.eq.s32.totalorder %s25, 1
      %p48 = por %p46, %p47
      %p50 = scmp.ne.s32.totalorder %s33, %s49
      %p51 = scmp.eq.s32.totalorder %s25, 0
      %p52 = por %p50, %p51
      %s54 = sadd.s32 %s53, 1
      %p57 = scmp.eq.s32.totalorder %s19, 1
      %p58 = scmp.ne.s32.totalorder %s53, %s55
      %p59 = scmp.eq.s32.totalorder %s19, 0
      %p60 = por %p58, %p59
      %p61 = scmp.ne.s32.totalorder %s53, %s55
      %p62 = scmp.eq.s32.totalorder %s24, 1
      %p63 = por %p61, %p62
      %p64 = scmp.ne.s32.totalorder %s55, %s56
      %p65 = scmp.eq.s32.totalorder %s24, 0
      %p66 = por %p64, %p65
      %p67 = scmp.ne.s32.totalorder %s55, %s56
      %p68 = scmp.eq.s32.totalorder %s25, 1
      %p69 = por %p67, %p68
      %p71 = scmp.ne.s32.totalorder %s56, %s70
      %p72 = scmp.eq.s32.totalorder %s25, 0
      %p73 = por %p71, %p72
      %s75 = sadd.s32 %s74, 1
      %p78 = scmp.eq.s32.totalorder %s19, 1
      %p79 = scmp.ne.s32.totalorder %s74, %s76
      %p80 = scmp.eq.s32.totalorder %s19, 0
      %p81 = por %p79, %p80
      %p82 = scmp.ne.s32.totalorder %s74, %s76
      %p83 = scmp.eq.s32.totalorder %s24, 1
      %p84 = por %p82, %p83
      %p85 = scmp.ne.s32.totalorder %s76, %s77
      %p86 = scmp.eq.s32.totalorder %s24, 0
      %p87 = por %p85, %p86
      %p88 = scmp.ne.s32.totalorder %s76, %s77
      %p89 = scmp.eq.s32.totalorder %s25, 1
      %p90 = por %p88, %p89
      %p92 = scmp.ne.s32.totalorder %s77, %s91
      %p93 = scmp.eq.s32.totalorder %s25, 0
      %p94 = por %p92, %p93
      %s96 = sadd.s32 %s95, 1
      %p99 = scmp.eq.s32.totalorder %s19, 1
      %p100 = scmp.ne.s32.totalorder %s95, %s97
      %p101 = scmp.eq.s32.totalorder %s19, 0
      %p102 = por %p100, %p101
      %p103 = scmp.ne.s32.totalorder %s95, %s97
      %p104 = scmp.eq.s32.totalorder %s24, 1
      %p105 = por %p103, %p104
      %p106 = scmp.ne.s32.totalorder %s97, %s98
      %p107 = scmp.eq.s32.totalorder %s24, 0
      %p108 = por %p106, %p107
      %p109 = scmp.ne.s32.totalorder %s97, %s98
      %p110 = scmp.eq.s32.totalorder %s25, 1
      %p111 = por %p109, %p110
      %p113 = scmp.ne.s32.totalorder %s98, %s112
      %p114 = scmp.eq.s32.totalorder %s25, 0
      %p115 = por %p113, %p114
      %s117 = sadd.s32 %s116, 1
      %p120 = scmp.eq.s32.totalorder %s19, 1
      %p121 = scmp.ne.s32.totalorder %s116, %s118
      %p122 = scmp.eq.s32.totalorder %s19, 0
      %p123 = por %p121, %p122
      %p124 = scmp.ne.s32.totalorder %s116, %s118
      %p125 = scmp.eq.s32.totalorder %s24, 1
      %p126 = por %p124, %p125
      %p127 = scmp.ne.s32.totalorder %s118, %s119
      %p128 = scmp.eq.s32.totalorder %s24, 0
      %p129 = por %p127, %p128
      %p130 = scmp.ne.s32.totalorder %s118, %s119
      %p131 = scmp.eq.s32.totalorder %s25, 1
      %p132 = por %p130, %p131
      %p134 = scmp.ne.s32.totalorder %s119, %s133
      %p135 = scmp.eq.s32.totalorder %s25, 0
      %p136 = por %p134, %p135
      %s137 = ssub.s32 %s19, %s26
      %p138 = scmp.eq.s32.totalorder %s137, 0
      %s140 = sadd.s32 %s139, 1
      %s141 = scalar_select %p138, %s139, %s140
      %p144 = pneg %p138
      %p145 = scmp.eq.s32.totalorder %s19, 1
      %p146 = por %p144, %p145
      %p147 = scmp.ne.s32.totalorder %s139, %s142
      %p148 = scmp.eq.s32.totalorder %s19, 0
      %p149 = por %p147, %p148
      %p150 = scmp.ne.s32.totalorder %s139, %s142
      %p151 = scmp.eq.s32.totalorder %s24, 1
      %p152 = por %p150, %p151
      %p153 = scmp.ne.s32.totalorder %s142, %s143
      %p154 = scmp.eq.s32.totalorder %s24, 0
      %p155 = por %p153, %p154
      %p156 = scmp.ne.s32.totalorder %s142, %s143
      %p157 = scmp.eq.s32.totalorder %s25, 1
      %p158 = por %p156, %p157
      %p160 = scmp.ne.s32.totalorder %s143, %s159
      %p161 = scmp.eq.s32.totalorder %s25, 0
      %p162 = por %p160, %p161
      %p163 = scmp.le.s32.totalorder 1, %s19
      %p164 = scmp.lt.s32.totalorder %s19, 3
      %p165 = pnand %p163, %p164
      %p166 = pneg %p165
      // Predicated region
      $region9: #{tpu_custom_call.1} parent=5 // pred_check
        _
      $region10: #{tpu_custom_call.1} parent=5 // pred_check_branch
        %168 = sbr.rel (%p165) target = $region12
      $region11: #{tpu_custom_call.1} parent=5 // pred_region
        %s169 = ssub.s32 %s19, 1
        // Predicated region
        $region13: #{tpu_custom_call.1} parent=11 // pred_check
          %p170 = pneg %p66
        $region14: #{tpu_custom_call.1} parent=11 // pred_check_branch
          %172 = sbr.rel (%p170) target = $region16
        $region15: #{tpu_custom_call.1} parent=11 // pred_region
          %174 = vsyncadd [#allocation6], 0
          %s175 = sshll.u32 %s1, 4
          %s176 = int_to_ptr.hbm [resolvable:$true] %s175
          %s177 = sshll.u32 [#allocation5], 4
          %s178 = int_to_ptr.vmem [resolvable:$true] %s177
          %183 = dma.hbm_to_vmem [thread:$0]  %s176, 4096, %s178, [#allocation6], 128, 128, 8
        $region16: #{tpu_custom_call.1} parent=11 // pred_fallthru
          _
        // Predicated region
        $region17: #{tpu_custom_call.1} parent=11 // pred_check
          %p184 = pneg %p87
        $region18: #{tpu_custom_call.1} parent=11 // pred_check_branch
          %186 = sbr.rel (%p184) target = $region20
        $region19: #{tpu_custom_call.1} parent=11 // pred_region
          %188 = vsyncadd [#allocation6], 0
          %s190 = sshll.u32 %s2, 4
          %s191 = int_to_ptr.hbm [resolvable:$true] %s190
          %s192 = sshll.u32 [#allocation7], 4
          %s193 = int_to_ptr.vmem [resolvable:$true] %s192
          %195 = dma.hbm_to_vmem [thread:$0]  %s191, 32, %s193, [#allocation6]
        $region20: #{tpu_custom_call.1} parent=11 // pred_fallthru
          _
        // Predicated region
        $region21: #{tpu_custom_call.1} parent=11 // pred_check
          %p196 = pneg %p108
        $region22: #{tpu_custom_call.1} parent=11 // pred_check_branch
          %198 = sbr.rel (%p196) target = $region24
        $region23: #{tpu_custom_call.1} parent=11 // pred_region
          %200 = vsyncadd [#allocation9], 0
          %s201 = sshll.u32 %s3, 4
          %s202 = int_to_ptr.hbm [resolvable:$true] %s201
          %s203 = sshll.u32 [#allocation8], 4
          %s204 = int_to_ptr.vmem [resolvable:$true] %s203
          %209 = dma.hbm_to_vmem [thread:$0]  %s202, 4096, %s204, [#allocation9], 128, 128, 8
        $region24: #{tpu_custom_call.1} parent=11 // pred_fallthru
          _
        // Predicated region
        $region25: #{tpu_custom_call.1} parent=11 // pred_check
          %p210 = pneg %p129
        $region26: #{tpu_custom_call.1} parent=11 // pred_check_branch
          %212 = sbr.rel (%p210) target = $region28
        $region27: #{tpu_custom_call.1} parent=11 // pred_region
          _
        $region28: #{tpu_custom_call.1} parent=11 // pred_fallthru
          _
      $region12: #{tpu_custom_call.1} parent=5 // pred_fallthru
        _
      %p213 = scmp.lt.s32.totalorder %s19, 2
      // Predicated region
      $region29: #{tpu_custom_call.1} parent=5 // pred_check
        %p214 = pneg %p213
      $region30: #{tpu_custom_call.1} parent=5 // pred_check_branch
        %216 = sbr.rel (%p214) target = $region32
      $region31: #{tpu_custom_call.1} parent=5 // pred_region
        // Predicated region
        $region33: #{tpu_custom_call.1} parent=31 // pred_check
          %p217 = pneg %p39
        $region34: #{tpu_custom_call.1} parent=31 // pred_check_branch
          %219 = sbr.rel (%p217) target = $region36
        $region35: #{tpu_custom_call.1} parent=31 // pred_region
          %s220 = sand.u32 %s29, 1
          %s221 = scalar_lea.sflag [#allocation3], %s220
          %s222 = sand.u32 %s29, 1
          %s223 = smul.addr %s222, 64
          %s224 = scalar_lea.vmem [#allocation2], %s223
          %s225 = smul.u32 4, %s19
          %227 = vsyncadd %s221, 0
          %s228 = smul.addr %s225, 2
          %s229 = smul.addr %s228, 8
          %s230 = scalar_lea.hbm %s0, %s229
          %s231 = sshll.u32 %s230, 4
          %s232 = int_to_ptr.hbm [resolvable:$true] %s231
          %s233 = sshll.u32 %s224, 4
          %s234 = int_to_ptr.vmem [resolvable:$true] %s233
          %239 = dma.hbm_to_vmem [thread:$0]  %s232, 1024, %s234, %s221, 256, 256, 16
        $region36: #{tpu_custom_call.1} parent=31 // pred_fallthru
          _
      $region32: #{tpu_custom_call.1} parent=5 // pred_fallthru
        _
      %p240 = scmp.le.s32.totalorder 1, %s19
      %p241 = scmp.lt.s32.totalorder %s19, 3
      %p242 = pnand %p240, %p241
      %p243 = pneg %p242
      // Predicated region
      $region37: #{tpu_custom_call.1} parent=5 // pred_check
        _
      $region38: #{tpu_custom_call.1} parent=5 // pred_check_branch
        %245 = sbr.rel (%p242) target = $region40
      $region39: #{tpu_custom_call.1} parent=5 // pred_region
        %s246 = ssub.s32 %s19, 1
        %s247 = sand.u32 %s32, 1
        %s248 = scalar_lea.sflag [#allocation3], %s247
        %s249 = sand.u32 %s32, 1
        %s250 = smul.addr %s249, 64
        %s251 = scalar_lea.vmem [#allocation2], %s250
        // Predicated region
        $region41: #{tpu_custom_call.1} parent=39 // pred_check
          %p252 = pneg %p45
        $region42: #{tpu_custom_call.1} parent=39 // pred_check_branch
          %254 = sbr.rel (%p252) target = $region44
        $region43: #{tpu_custom_call.1} parent=39 // pred_region
          %256 = dma.done %s248, 1024
        $region44: #{tpu_custom_call.1} parent=39 // pred_fallthru
          _
        // Predicated region
        $region45: #{tpu_custom_call.1} parent=39 // pred_check
          %p257 = pneg %p66
        $region46: #{tpu_custom_call.1} parent=39 // pred_check_branch
          %259 = sbr.rel (%p257) target = $region48
        $region47: #{tpu_custom_call.1} parent=39 // pred_region
          %261 = dma.done [#allocation6], 4096
        $region48: #{tpu_custom_call.1} parent=39 // pred_fallthru
          _
        // Predicated region
        $region49: #{tpu_custom_call.1} parent=39 // pred_check
          %p262 = pneg %p87
        $region50: #{tpu_custom_call.1} parent=39 // pred_check_branch
          %264 = sbr.rel (%p262) target = $region52
        $region51: #{tpu_custom_call.1} parent=39 // pred_region
          %266 = dma.done [#allocation6], 32
        $region52: #{tpu_custom_call.1} parent=39 // pred_fallthru
          _
        // Predicated region
        $region53: #{tpu_custom_call.1} parent=39 // pred_check
          %p267 = pneg %p108
        $region54: #{tpu_custom_call.1} parent=39 // pred_check_branch
          %269 = sbr.rel (%p267) target = $region56
        $region55: #{tpu_custom_call.1} parent=39 // pred_region
          %271 = dma.done [#allocation9], 4096
        $region56: #{tpu_custom_call.1} parent=39 // pred_fallthru
          _
        %s272 = sand.u32 %s32, 1
        %s273 = scalar_lea.sflag [#allocation3], %s272
        %s274 = sand.u32 %s32, 1
        %s275 = smul.addr %s274, 64
        %s276 = scalar_lea.vmem [#allocation2], %s275
        %p277 = pneg %p45
        %p278 = pneg %p42
        %p279 = pneg %p66
        %p280 = pneg %p63
        %p281 = pneg %p87
        %p282 = pneg %p84
        %p283 = pneg %p108
        %p284 = pneg %p105
        %p285 = pneg %p129
        %p286 = pneg %p126
        %p287 = pneg %p155
        %p288 = pneg %p152
        %s289 = sand.u32 %s142, 1
        %s290 = scalar_lea.sflag [#allocation4], %s289
        %s291 = sand.u32 %s142, 1
        %s292 = smul.addr %s291, 64
        %s293 = scalar_lea.vmem [#allocation10], %s292
        %s294 = smul.u32 4, %s24
        %s295 = smul.u32 4, %s24
        %v296 = vld [vmem:[%s251] sm:$0xff]
        %v297 = vld [vmem:[%s251 + $0x8] sm:$0xff]
        %v298 = vld [vmem:[%s251 + $0x10] sm:$0xff]
        %v299 = vld [vmem:[%s251 + $0x18] sm:$0xff]
        %v300 = vld [vmem:[%s251 + $0x20] sm:$0xff]
        %v301 = vld [vmem:[%s251 + $0x28] sm:$0xff]
        %v302 = vld [vmem:[%s251 + $0x30] sm:$0xff]
        %v303 = vld [vmem:[%s251 + $0x38] sm:$0xff]
        %v304 = vpack.c.bf16 %v298, %v296
        %v305 = vpack.c.bf16 %v299, %v297
        %v306 = vpack.c.bf16 %v302, %v300
        %v307 = vpack.c.bf16 %v303, %v301
        %v308 = vld [vmem:[#allocation5] sm:$0xff]
        %v309 = vld [vmem:[#allocation5 + $0x8] sm:$0xff]
        %v310 = vld [vmem:[#allocation5 + $0x10] sm:$0xff]
        %v311 = vld [vmem:[#allocation5 + $0x18] sm:$0xff]
        %v312 = vld [vmem:[#allocation5 + $0x20] sm:$0xff]
        %v313 = vld [vmem:[#allocation5 + $0x28] sm:$0xff]
        %v314 = vld [vmem:[#allocation5 + $0x30] sm:$0xff]
        %v315 = vld [vmem:[#allocation5 + $0x38] sm:$0xff]
        %v316 = vld [vmem:[#allocation5 + $0x40] sm:$0xff]
        %v317 = vld [vmem:[#allocation5 + $0x48] sm:$0xff]
        %v318 = vld [vmem:[#allocation5 + $0x50] sm:$0xff]
        %v319 = vld [vmem:[#allocation5 + $0x58] sm:$0xff]
        %v320 = vld [vmem:[#allocation5 + $0x60] sm:$0xff]
        %v321 = vld [vmem:[#allocation5 + $0x68] sm:$0xff]
        %v322 = vld [vmem:[#allocation5 + $0x70] sm:$0xff]
        %v323 = vld [vmem:[#allocation5 + $0x78] sm:$0xff]
        %v324 = vld [vmem:[#allocation5 + $0x80] sm:$0xff]
        %v325 = vld [vmem:[#allocation5 + $0x88] sm:$0xff]
        %v326 = vld [vmem:[#allocation5 + $0x90] sm:$0xff]
        %v327 = vld [vmem:[#allocation5 + $0x98] sm:$0xff]
        %v328 = vld [vmem:[#allocation5 + $0xa0] sm:$0xff]
        %v329 = vld [vmem:[#allocation5 + $0xa8] sm:$0xff]
        %v330 = vld [vmem:[#allocation5 + $0xb0] sm:$0xff]
        %v331 = vld [vmem:[#allocation5 + $0xb8] sm:$0xff]
        %v332 = vld [vmem:[#allocation5 + $0xc0] sm:$0xff]
        %v333 = vld [vmem:[#allocation5 + $0xc8] sm:$0xff]
        %v334 = vld [vmem:[#allocation5 + $0xd0] sm:$0xff]
        %v335 = vld [vmem:[#allocation5 + $0xd8] sm:$0xff]
        %v336 = vld [vmem:[#allocation5 + $0xe0] sm:$0xff]
        %v337 = vld [vmem:[#allocation5 + $0xe8] sm:$0xff]
        %v338 = vld [vmem:[#allocation5 + $0xf0] sm:$0xff]
        %v339 = vld [vmem:[#allocation5 + $0xf8] sm:$0xff]
        %v340 = vld [vmem:[#allocation7] sm:$0x3]
        %v342 = vperm.slane %v340, 0
        %v343 = vperm.slane %v340, 1
        %v378 = vunpack.c.l.b16 %v308
        %v379 = vunpack.c.h.b16 %v308
        %v380 = vunpack.c.l.b16 %v309
        %v381 = vunpack.c.h.b16 %v309
        %v382 = vunpack.c.l.b16 %v310
        %v383 = vunpack.c.h.b16 %v310
        %v384 = vunpack.c.l.b16 %v311
        %v385 = vunpack.c.h.b16 %v311
        %v386 = vunpack.c.l.b16 %v312
        %v387 = vunpack.c.h.b16 %v312
        %v388 = vunpack.c.l.b16 %v313
        %v389 = vunpack.c.h.b16 %v313
        %v390 = vunpack.c.l.b16 %v314
        %v391 = vunpack.c.h.b16 %v314
        %v392 = vunpack.c.l.b16 %v315
        %v393 = vunpack.c.h.b16 %v315
        %v394 = vunpack.c.l.b16 %v316
        %v395 = vunpack.c.h.b16 %v316
        %v396 = vunpack.c.l.b16 %v317
        %v397 = vunpack.c.h.b16 %v317
        %v398 = vunpack.c.l.b16 %v318
        %v399 = vunpack.c.h.b16 %v318
        %v400 = vunpack.c.l.b16 %v319
        %v401 = vunpack.c.h.b16 %v319
        %v402 = vunpack.c.l.b16 %v320
        %v403 = vunpack.c.h.b16 %v320
        %v404 = vunpack.c.l.b16 %v321
        %v405 = vunpack.c.h.b16 %v321
        %v406 = vunpack.c.l.b16 %v322
        %v407 = vunpack.c.h.b16 %v322
        %v408 = vunpack.c.l.b16 %v323
        %v409 = vunpack.c.h.b16 %v323
        %v410 = vunpack.c.l.b16 %v324
        %v411 = vunpack.c.h.b16 %v324
        %v412 = vunpack.c.l.b16 %v325
        %v413 = vunpack.c.h.b16 %v325
        %v414 = vunpack.c.l.b16 %v326
        %v415 = vunpack.c.h.b16 %v326
        %v416 = vunpack.c.l.b16 %v327
        %v417 = vunpack.c.h.b16 %v327
        %v418 = vunpack.c.l.b16 %v328
        %v419 = vunpack.c.h.b16 %v328
        %v420 = vunpack.c.l.b16 %v329
        %v421 = vunpack.c.h.b16 %v329
        %v422 = vunpack.c.l.b16 %v330
        %v423 = vunpack.c.h.b16 %v330
        %v424 = vunpack.c.l.b16 %v331
        %v425 = vunpack.c.h.b16 %v331
        %v426 = vunpack.c.l.b16 %v332
        %v427 = vunpack.c.h.b16 %v332
        %v428 = vunpack.c.l.b16 %v333
        %v429 = vunpack.c.h.b16 %v333
        %v430 = vunpack.c.l.b16 %v334
        %v431 = vunpack.c.h.b16 %v334
        %v432 = vunpack.c.l.b16 %v335
        %v433 = vunpack.c.h.b16 %v335
        %v434 = vunpack.c.l.b16 %v336
        %v435 = vunpack.c.h.b16 %v336
        %v436 = vunpack.c.l.b16 %v337
        %v437 = vunpack.c.h.b16 %v337
        %v438 = vunpack.c.l.b16 %v338
        %v439 = vunpack.c.h.b16 %v338
        %v440 = vunpack.c.l.b16 %v339
        %v441 = vunpack.c.h.b16 %v339
        %v442 = vpack.c.b16 %v380, %v378
        %v443 = vpack.c.b16 %v381, %v379
        %v444 = vpack.c.b16 %v384, %v382
        %v445 = vpack.c.b16 %v385, %v383
        %v446 = vpack.c.b16 %v388, %v386
        %v447 = vpack.c.b16 %v389, %v387
        %v448 = vpack.c.b16 %v392, %v390
        %v449 = vpack.c.b16 %v393, %v391
        %v450 = vpack.c.b16 %v396, %v394
        %v451 = vpack.c.b16 %v397, %v395
        %v452 = vpack.c.b16 %v400, %v398
        %v453 = vpack.c.b16 %v401, %v399
        %v454 = vpack.c.b16 %v404, %v402
        %v455 = vpack.c.b16 %v405, %v403
        %v456 = vpack.c.b16 %v408, %v406
        %v457 = vpack.c.b16 %v409, %v407
        %v458 = vpack.c.b16 %v412, %v410
        %v459 = vpack.c.b16 %v413, %v411
        %v460 = vpack.c.b16 %v416, %v414
        %v461 = vpack.c.b16 %v417, %v415
        %v462 = vpack.c.b16 %v420, %v418
        %v463 = vpack.c.b16 %v421, %v419
        %v464 = vpack.c.b16 %v424, %v422
        %v465 = vpack.c.b16 %v425, %v423
        %v466 = vpack.c.b16 %v428, %v426
        %v467 = vpack.c.b16 %v429, %v427
        %v468 = vpack.c.b16 %v432, %v430
        %v469 = vpack.c.b16 %v433, %v431
        %v470 = vpack.c.b16 %v436, %v434
        %v471 = vpack.c.b16 %v437, %v435
        %v472 = vpack.c.b16 %v440, %v438
        %v473 = vpack.c.b16 %v441, %v439
        %506 = vmatpush.bf16.msra.mxu0 %v456
        %507 = vmatpush.bf16.msra.mxu0 %v454
        %508 = vmatpush.bf16.msra.mxu0 %v452
        %509 = vmatpush.bf16.msra.mxu0 %v450
        %510 = vmatpush.bf16.msra.mxu0 %v448
        %511 = vmatpush.bf16.msra.mxu0 %v446
        %512 = vmatpush.bf16.msra.mxu0 %v444
        %513 = vmatpush.bf16.msra.mxu0 %v442
        %514 = vmatmul.bf16.gmra.mxu0 %v304
        %v515 = vpop.f32.mrf.mxu0
        %v516 = vadd.f32 %v342, %v515
        %v517 = vpop.f32.mrf.mxu0
        %v518 = vadd.f32 %v342, %v517
        %519 = vmatmul.bf16.gmra.mxu0 %v306
        %v520 = vpop.f32.mrf.mxu0
        %v521 = vadd.f32 %v342, %v520
        %v522 = vpop.f32.mrf.mxu0
        %v523 = vadd.f32 %v342, %v522
        %524 = vdwg.mxu0
        %525 = vmatpush.bf16.msra.mxu0 %v472
        %526 = vmatpush.bf16.msra.mxu0 %v470
        %527 = vmatpush.bf16.msra.mxu0 %v468
        %528 = vmatpush.bf16.msra.mxu0 %v466
        %529 = vmatpush.bf16.msra.mxu0 %v464
        %530 = vmatpush.bf16.msra.mxu0 %v462
        %531 = vmatpush.bf16.msra.mxu0 %v460
        %532 = vmatpush.bf16.msra.mxu0 %v458
        %533 = vmatmul.bf16.gmra.mxu0 %v305
        %v534 = vpop.f32.mrf.mxu0
        %v535 = vadd.f32 %v516, %v534
        %v536 = vpop.f32.mrf.mxu0
        %v537 = vadd.f32 %v518, %v536
        %538 = vmatmul.bf16.gmra.mxu0 %v307
        %v539 = vpop.f32.mrf.mxu0
        %v540 = vadd.f32 %v521, %v539
        %v541 = vpop.f32.mrf.mxu0
        %v542 = vadd.f32 %v523, %v541
        %543 = vdwg.mxu0
        %544 = vmatpush.bf16.msra.mxu0 %v457
        %545 = vmatpush.bf16.msra.mxu0 %v455
        %546 = vmatpush.bf16.msra.mxu0 %v453
        %547 = vmatpush.bf16.msra.mxu0 %v451
        %548 = vmatpush.bf16.msra.mxu0 %v449
        %549 = vmatpush.bf16.msra.mxu0 %v447
        %550 = vmatpush.bf16.msra.mxu0 %v445
        %551 = vmatpush.bf16.msra.mxu0 %v443
        %552 = vmatmul.bf16.gmra.mxu0 %v304
        %v553 = vpop.f32.mrf.mxu0
        %v554 = vadd.f32 %v343, %v553
        %v555 = vpop.f32.mrf.mxu0
        %v556 = vadd.f32 %v343, %v555
        %557 = vmatmul.bf16.gmra.mxu0 %v306
        %v558 = vpop.f32.mrf.mxu0
        %v559 = vadd.f32 %v343, %v558
        %v560 = vpop.f32.mrf.mxu0
        %v561 = vadd.f32 %v343, %v560
        %562 = vdwg.mxu0
        %563 = vmatpush.bf16.msra.mxu0 %v473
        %564 = vmatpush.bf16.msra.mxu0 %v471
        %565 = vmatpush.bf16.msra.mxu0 %v469
        %566 = vmatpush.bf16.msra.mxu0 %v467
        %567 = vmatpush.bf16.msra.mxu0 %v465
        %568 = vmatpush.bf16.msra.mxu0 %v463
        %569 = vmatpush.bf16.msra.mxu0 %v461
        %570 = vmatpush.bf16.msra.mxu0 %v459
        %571 = vmatmul.bf16.gmra.mxu0 %v305
        %v572 = vpop.f32.mrf.mxu0
        %v573 = vadd.f32 %v554, %v572
        %v574 = vpop.f32.mrf.mxu0
        %v575 = vadd.f32 %v556, %v574
        %576 = vmatmul.bf16.gmra.mxu0 %v307
        %v577 = vpop.f32.mrf.mxu0
        %v578 = vadd.f32 %v559, %v577
        %v579 = vpop.f32.mrf.mxu0
        %v580 = vadd.f32 %v561, %v579
        %581 = vdwg.mxu0
        %v582 = vmax.f32 %v535, 0.0
        %v583 = vmax.f32 %v573, 0.0
        %v584 = vmax.f32 %v537, 0.0
        %v585 = vmax.f32 %v575, 0.0
        %v586 = vmax.f32 %v540, 0.0
        %v587 = vmax.f32 %v578, 0.0
        %v588 = vmax.f32 %v542, 0.0
        %v589 = vmax.f32 %v580, 0.0
        %v590 = vpack.c.bf16 %v584, %v582
        %v591 = vpack.c.bf16 %v585, %v583
        %v592 = vpack.c.bf16 %v588, %v586
        %v593 = vpack.c.bf16 %v589, %v587
        %v594 = vld [vmem:[#allocation8] sm:$0xff]
        %v595 = vld [vmem:[#allocation8 + $0x8] sm:$0xff]
        %v596 = vld [vmem:[#allocation8 + $0x10] sm:$0xff]
        %v597 = vld [vmem:[#allocation8 + $0x18] sm:$0xff]
        %v598 = vld [vmem:[#allocation8 + $0x20] sm:$0xff]
        %v599 = vld [vmem:[#allocation8 + $0x28] sm:$0xff]
        %v600 = vld [vmem:[#allocation8 + $0x30] sm:$0xff]
        %v601 = vld [vmem:[#allocation8 + $0x38] sm:$0xff]
        %v602 = vld [vmem:[#allocation8 + $0x40] sm:$0xff]
        %v603 = vld [vmem:[#allocation8 + $0x48] sm:$0xff]
        %v604 = vld [vmem:[#allocation8 + $0x50] sm:$0xff]
        %v605 = vld [vmem:[#allocation8 + $0x58] sm:$0xff]
        %v606 = vld [vmem:[#allocation8 + $0x60] sm:$0xff]
        %v607 = vld [vmem:[#allocation8 + $0x68] sm:$0xff]
        %v608 = vld [vmem:[#allocation8 + $0x70] sm:$0xff]
        %v609 = vld [vmem:[#allocation8 + $0x78] sm:$0xff]
        %v610 = vld [vmem:[#allocation8 + $0x80] sm:$0xff]
        %v611 = vld [vmem:[#allocation8 + $0x88] sm:$0xff]
        %v612 = vld [vmem:[#allocation8 + $0x90] sm:$0xff]
        %v613 = vld [vmem:[#allocation8 + $0x98] sm:$0xff]
        %v614 = vld [vmem:[#allocation8 + $0xa0] sm:$0xff]
        %v615 = vld [vmem:[#allocation8 + $0xa8] sm:$0xff]
        %v616 = vld [vmem:[#allocation8 + $0xb0] sm:$0xff]
        %v617 = vld [vmem:[#allocation8 + $0xb8] sm:$0xff]
        %v618 = vld [vmem:[#allocation8 + $0xc0] sm:$0xff]
        %v619 = vld [vmem:[#allocation8 + $0xc8] sm:$0xff]
        %v620 = vld [vmem:[#allocation8 + $0xd0] sm:$0xff]
        %v621 = vld [vmem:[#allocation8 + $0xd8] sm:$0xff]
        %v622 = vld [vmem:[#allocation8 + $0xe0] sm:$0xff]
        %v623 = vld [vmem:[#allocation8 + $0xe8] sm:$0xff]
        %v624 = vld [vmem:[#allocation8 + $0xf0] sm:$0xff]
        %v625 = vld [vmem:[#allocation8 + $0xf8] sm:$0xff]
        %v626 = vld [vmem:[%s4] sm:$0x3]
        %v628 = vperm.slane %v626, 0
        %v629 = vperm.slane %v626, 1
        %v664 = vunpack.c.l.b16 %v594
        %v665 = vunpack.c.h.b16 %v594
        %v666 = vunpack.c.l.b16 %v595
        %v667 = vunpack.c.h.b16 %v595
        %v668 = vunpack.c.l.b16 %v596
        %v669 = vunpack.c.h.b16 %v596
        %v670 = vunpack.c.l.b16 %v597
        %v671 = vunpack.c.h.b16 %v597
        %v672 = vunpack.c.l.b16 %v598
        %v673 = vunpack.c.h.b16 %v598
        %v674 = vunpack.c.l.b16 %v599
        %v675 = vunpack.c.h.b16 %v599
        %v676 = vunpack.c.l.b16 %v600
        %v677 = vunpack.c.h.b16 %v600
        %v678 = vunpack.c.l.b16 %v601
        %v679 = vunpack.c.h.b16 %v601
        %v680 = vunpack.c.l.b16 %v602
        %v681 = vunpack.c.h.b16 %v602
        %v682 = vunpack.c.l.b16 %v603
        %v683 = vunpack.c.h.b16 %v603
        %v684 = vunpack.c.l.b16 %v604
        %v685 = vunpack.c.h.b16 %v604
        %v686 = vunpack.c.l.b16 %v605
        %v687 = vunpack.c.h.b16 %v605
        %v688 = vunpack.c.l.b16 %v606
        %v689 = vunpack.c.h.b16 %v606
        %v690 = vunpack.c.l.b16 %v607
        %v691 = vunpack.c.h.b16 %v607
        %v692 = vunpack.c.l.b16 %v608
        %v693 = vunpack.c.h.b16 %v608
        %v694 = vunpack.c.l.b16 %v609
        %v695 = vunpack.c.h.b16 %v609
        %v696 = vunpack.c.l.b16 %v610
        %v697 = vunpack.c.h.b16 %v610
        %v698 = vunpack.c.l.b16 %v611
        %v699 = vunpack.c.h.b16 %v611
        %v700 = vunpack.c.l.b16 %v612
        %v701 = vunpack.c.h.b16 %v612
        %v702 = vunpack.c.l.b16 %v613
        %v703 = vunpack.c.h.b16 %v613
        %v704 = vunpack.c.l.b16 %v614
        %v705 = vunpack.c.h.b16 %v614
        %v706 = vunpack.c.l.b16 %v615
        %v707 = vunpack.c.h.b16 %v615
        %v708 = vunpack.c.l.b16 %v616
        %v709 = vunpack.c.h.b16 %v616
        %v710 = vunpack.c.l.b16 %v617
        %v711 = vunpack.c.h.b16 %v617
        %v712 = vunpack.c.l.b16 %v618
        %v713 = vunpack.c.h.b16 %v618
        %v714 = vunpack.c.l.b16 %v619
        %v715 = vunpack.c.h.b16 %v619
        %v716 = vunpack.c.l.b16 %v620
        %v717 = vunpack.c.h.b16 %v620
        %v718 = vunpack.c.l.b16 %v621
        %v719 = vunpack.c.h.b16 %v621
        %v720 = vunpack.c.l.b16 %v622
        %v721 = vunpack.c.h.b16 %v622
        %v722 = vunpack.c.l.b16 %v623
        %v723 = vunpack.c.h.b16 %v623
        %v724 = vunpack.c.l.b16 %v624
        %v725 = vunpack.c.h.b16 %v624
        %v726 = vunpack.c.l.b16 %v625
        %v727 = vunpack.c.h.b16 %v625
        %v728 = vpack.c.b16 %v666, %v664
        %v729 = vpack.c.b16 %v667, %v665
        %v730 = vpack.c.b16 %v670, %v668
        %v731 = vpack.c.b16 %v671, %v669
        %v732 = vpack.c.b16 %v674, %v672
        %v733 = vpack.c.b16 %v675, %v673
        %v734 = vpack.c.b16 %v678, %v676
        %v735 = vpack.c.b16 %v679, %v677
        %v736 = vpack.c.b16 %v682, %v680
        %v737 = vpack.c.b16 %v683, %v681
        %v738 = vpack.c.b16 %v686, %v684
        %v739 = vpack.c.b16 %v687, %v685
        %v740 = vpack.c.b16 %v690, %v688
        %v741 = vpack.c.b16 %v691, %v689
        %v742 = vpack.c.b16 %v694, %v692
        %v743 = vpack.c.b16 %v695, %v693
        %v744 = vpack.c.b16 %v698, %v696
        %v745 = vpack.c.b16 %v699, %v697
        %v746 = vpack.c.b16 %v702, %v700
        %v747 = vpack.c.b16 %v703, %v701
        %v748 = vpack.c.b16 %v706, %v704
        %v749 = vpack.c.b16 %v707, %v705
        %v750 = vpack.c.b16 %v710, %v708
        %v751 = vpack.c.b16 %v711, %v709
        %v752 = vpack.c.b16 %v714, %v712
        %v753 = vpack.c.b16 %v715, %v713
        %v754 = vpack.c.b16 %v718, %v716
        %v755 = vpack.c.b16 %v719, %v717
        %v756 = vpack.c.b16 %v722, %v720
        %v757 = vpack.c.b16 %v723, %v721
        %v758 = vpack.c.b16 %v726, %v724
        %v759 = vpack.c.b16 %v727, %v725
        %792 = vmatpush.bf16.msra.mxu0 %v742
        %793 = vmatpush.bf16.msra.mxu0 %v740
        %794 = vmatpush.bf16.msra.mxu0 %v738
        %795 = vmatpush.bf16.msra.mxu0 %v736
        %796 = vmatpush.bf16.msra.mxu0 %v734
        %797 = vmatpush.bf16.msra.mxu0 %v732
        %798 = vmatpush.bf16.msra.mxu0 %v730
        %799 = vmatpush.bf16.msra.mxu0 %v728
        %800 = vmatmul.bf16.gmra.mxu0 %v590
        %v801 = vpop.f32.mrf.mxu0
        %v802 = vadd.f32 %v628, %v801
        %v803 = vpop.f32.mrf.mxu0
        %v804 = vadd.f32 %v628, %v803
        %805 = vmatmul.bf16.gmra.mxu0 %v592
        %v806 = vpop.f32.mrf.mxu0
        %v807 = vadd.f32 %v628, %v806
        %v808 = vpop.f32.mrf.mxu0
        %v809 = vadd.f32 %v628, %v808
        %810 = vdwg.mxu0
        %811 = vmatpush.bf16.msra.mxu0 %v758
        %812 = vmatpush.bf16.msra.mxu0 %v756
        %813 = vmatpush.bf16.msra.mxu0 %v754
        %814 = vmatpush.bf16.msra.mxu0 %v752
        %815 = vmatpush.bf16.msra.mxu0 %v750
        %816 = vmatpush.bf16.msra.mxu0 %v748
        %817 = vmatpush.bf16.msra.mxu0 %v746
        %818 = vmatpush.bf16.msra.mxu0 %v744
        %819 = vmatmul.bf16.gmra.mxu0 %v591
        %v820 = vpop.f32.mrf.mxu0
        %v821 = vadd.f32 %v802, %v820
        %v822 = vpop.f32.mrf.mxu0
        %v823 = vadd.f32 %v804, %v822
        %824 = vmatmul.bf16.gmra.mxu0 %v593
        %v825 = vpop.f32.mrf.mxu0
        %v826 = vadd.f32 %v807, %v825
        %v827 = vpop.f32.mrf.mxu0
        %v828 = vadd.f32 %v809, %v827
        %829 = vdwg.mxu0
        %830 = vmatpush.bf16.msra.mxu0 %v743
        %831 = vmatpush.bf16.msra.mxu0 %v741
        %832 = vmatpush.bf16.msra.mxu0 %v739
        %833 = vmatpush.bf16.msra.mxu0 %v737
        %834 = vmatpush.bf16.msra.mxu0 %v735
        %835 = vmatpush.bf16.msra.mxu0 %v733
        %836 = vmatpush.bf16.msra.mxu0 %v731
        %837 = vmatpush.bf16.msra.mxu0 %v729
        %838 = vmatmul.bf16.gmra.mxu0 %v590
        %v839 = vpop.f32.mrf.mxu0
        %v840 = vadd.f32 %v629, %v839
        %v841 = vpop.f32.mrf.mxu0
        %v842 = vadd.f32 %v629, %v841
        %843 = vmatmul.bf16.gmra.mxu0 %v592
        %v844 = vpop.f32.mrf.mxu0
        %v845 = vadd.f32 %v629, %v844
        %v846 = vpop.f32.mrf.mxu0
        %v847 = vadd.f32 %v629, %v846
        %848 = vdwg.mxu0
        %849 = vmatpush.bf16.msra.mxu0 %v759
        %850 = vmatpush.bf16.msra.mxu0 %v757
        %851 = vmatpush.bf16.msra.mxu0 %v755
        %852 = vmatpush.bf16.msra.mxu0 %v753
        %853 = vmatpush.bf16.msra.mxu0 %v751
        %854 = vmatpush.bf16.msra.mxu0 %v749
        %855 = vmatpush.bf16.msra.mxu0 %v747
        %856 = vmatpush.bf16.msra.mxu0 %v745
        %857 = vmatmul.bf16.gmra.mxu0 %v591
        %v858 = vpop.f32.mrf.mxu0
        %v859 = vadd.f32 %v840, %v858
        %v860 = vpop.f32.mrf.mxu0
        %v861 = vadd.f32 %v842, %v860
        %862 = vmatmul.bf16.gmra.mxu0 %v593
        %v863 = vpop.f32.mrf.mxu0
        %v864 = vadd.f32 %v845, %v863
        %v865 = vpop.f32.mrf.mxu0
        %v866 = vadd.f32 %v847, %v865
        %867 = vdwg.mxu0
        %v868 = vadd.f32 %v821, %v296
        %v869 = vadd.f32 %v859, %v297
        %v870 = vadd.f32 %v823, %v298
        %v871 = vadd.f32 %v861, %v299
        %v872 = vadd.f32 %v826, %v300
        %v873 = vadd.f32 %v864, %v301
        %v874 = vadd.f32 %v828, %v302
        %v875 = vadd.f32 %v866, %v303
        %876 = vst [vmem:[%s293] sm:$0xff] %v868
        %877 = vst [vmem:[%s293 + $0x8] sm:$0xff] %v869
        %878 = vst [vmem:[%s293 + $0x10] sm:$0xff] %v870
        %879 = vst [vmem:[%s293 + $0x18] sm:$0xff] %v871
        %880 = vst [vmem:[%s293 + $0x20] sm:$0xff] %v872
        %881 = vst [vmem:[%s293 + $0x28] sm:$0xff] %v873
        %882 = vst [vmem:[%s293 + $0x30] sm:$0xff] %v874
        %883 = vst [vmem:[%s293 + $0x38] sm:$0xff] %v875
        %s884 = sand.u32 %s142, 1
        %s885 = scalar_lea.sflag [#allocation4], %s884
        %s886 = sand.u32 %s142, 1
        %s887 = smul.addr %s886, 64
        %s888 = scalar_lea.vmem [#allocation10], %s887
        // Predicated region
        $region57: #{tpu_custom_call.1} parent=39 // pred_check
          %p889 = pneg %p152
        $region58: #{tpu_custom_call.1} parent=39 // pred_check_branch
          %891 = sbr.rel (%p889) target = $region60
        $region59: #{tpu_custom_call.1} parent=39 // pred_region
          %s892 = smul.u32 4, %s24
          %894 = vsyncadd %s885, 0
          %s895 = smul.addr %s892, 2
          %s896 = smul.addr %s895, 8
          %s897 = scalar_lea.hbm %s5, %s896
          %s898 = sshll.u32 %s888, 4
          %s899 = int_to_ptr.vmem [resolvable:$true] %s898
          %s900 = sshll.u32 %s897, 4
          %s901 = int_to_ptr.hbm [resolvable:$true] %s900
          %906 = dma.vmem_to_hbm [thread:$0]  %s899, 1024, %s901, %s885, 256, 256, 16
        $region60: #{tpu_custom_call.1} parent=39 // pred_fallthru
          _
      $region40: #{tpu_custom_call.1} parent=5 // pred_fallthru
        _
      %p907 = scmp.le.s32.totalorder 2, %s19
      // Predicated region
      $region61: #{tpu_custom_call.1} parent=5 // pred_check
        %p908 = pneg %p907
      $region62: #{tpu_custom_call.1} parent=5 // pred_check_branch
        %910 = sbr.rel (%p908) target = $region64
      $region63: #{tpu_custom_call.1} parent=5 // pred_region
        %s911 = ssub.s32 %s19, 2
        // Predicated region
        $region65: #{tpu_custom_call.1} parent=63 // pred_check
          %p912 = pneg %p158
        $region66: #{tpu_custom_call.1} parent=63 // pred_check_branch
          %914 = sbr.rel (%p912) target = $region68
        $region67: #{tpu_custom_call.1} parent=63 // pred_region
          %s915 = sand.u32 %s143, 1
          %s916 = scalar_lea.sflag [#allocation4], %s915
          %s917 = sand.u32 %s143, 1
          %s918 = smul.addr %s917, 64
          %s919 = scalar_lea.vmem [#allocation10], %s918
          %921 = dma.done %s916, 1024
        $region68: #{tpu_custom_call.1} parent=63 // pred_fallthru
          _
      $region64: #{tpu_custom_call.1} parent=5 // pred_fallthru
        _
    $region6: #{tpu_custom_call.1} parent=1 // loop_footer
      %s23 = sadd.s32 1, %s19
    $region7: #{tpu_custom_call.1} parent=1 // loop_footer_branch
      %18 = sbr.rel target = $region3
    $region8: #{tpu_custom_call.1} parent=1 // loop_exit
      _
    %922 = vsyncpa [#allocation3], 1
    %s923 = scalar_lea.sflag [#allocation3], 1
    %924 = vsyncpa %s923, 1
    %925 = vsyncpa [#allocation6], 1
    %926 = vsyncpa [#allocation9], 1
    %927 = vsyncpa [#allocation4], 1
    %s928 = scalar_lea.sflag [#allocation4], 1
    %929 = vsyncpa %s928, 1

</llo_original>
